<compile_context>
chip_gen: v7x
topology: tpu7x:2x2x1
jax: 0.10.0
libtpu: 0.0.40
codegen_flags: <defaults>
</compile_context>

<pallas_src>
import functools

import jax
import jax.numpy as jnp
from jax.experimental import pallas as pl
from jax.experimental.pallas import tpu as pltpu

N = 128      # batch size
D_IN = 8     # input features
HIDDEN = 32  # MLP hidden width
NEIGS = 4    # number of eigenfunctions


# ---------------------------------------------------------------------------
# Fused kernel: MLP forward + operator + sigma Gram + 4x4 Cholesky +
# triangular inverse + trace loss + residual loss, single invocation.
# All arrays are feature-major so the batch lives on the lane axis.
# ---------------------------------------------------------------------------
def _spinx_fused_kernel(xt_ref, pk_ref, out_ref, *, d_in, hidden, neigs, inv_n):
    f32 = jnp.float32
    ne = neigs

    # --- unpack the packed parameter block (static slices -> vreg selects) ---
    pk = pk_ref[...]                                       # (H+NE, ncols)
    w1t = pk[0:hidden, 0:d_in]                             # (H, D_IN)
    b1t = pk[0:hidden, d_in:d_in + 1]                      # (H, 1)
    w2t = pk[hidden:hidden + ne, 0:hidden]                 # (NE, H)
    b2t = pk[hidden:hidden + ne, hidden:hidden + 1]        # (NE, 1)
    tw = pk[hidden:hidden + ne, hidden + 1:hidden + 2]     # (NE, 1)

    # --- model forward (MLP) + multiplication operator, batch on lanes ---
    xt = xt_ref[...]                                                 # (D_IN, N)
    n = xt.shape[1]
    h = jnp.tanh(jnp.dot(w1t, xt, preferred_element_type=f32) + b1t)   # (H, N)
    phit = jnp.dot(w2t, h, preferred_element_type=f32) + b2t            # (NE, N)
    v = jnp.sum(xt * xt, axis=0, keepdims=True)                         # (1, N)
    tphit = v * phit                                                     # (NE, N)

    # --- sigma Gram matrix (f32 accumulation, feeds the Cholesky) ---
    sigma = jnp.dot(phit, phit.T, preferred_element_type=f32) * inv_n   # (NE,NE)

    ROW = jax.lax.broadcasted_iota(jnp.int32, (ne, ne), 0)
    COL = jax.lax.broadcasted_iota(jnp.int32, (ne, ne), 1)
    rcol = jax.lax.broadcasted_iota(jnp.int32, (ne, 1), 0)
    crow = jax.lax.broadcasted_iota(jnp.int32, (1, ne), 1)

    # --- unrolled outer-product Cholesky (sigma = L L^T) fused with the
    #     triangular inverse: x_inv accumulates L^{-1} via elementary rank-1
    #     updates  X <- (I - u_j e_j^T) X,  u_j = (l_j - e_j) / L[j,j].
    #     (Non-PD sigma propagates NaNs, like jnp.linalg.cholesky.)
    amat = sigma
    x_inv = (ROW == COL).astype(f32)                                # identity
    for j in range(ne):
        colj = jnp.sum(jnp.where((COL == j) & (ROW >= j), amat, 0.0),
                       axis=1, keepdims=True)                       # A[:, j], rows >= j
        rowj = jnp.sum(jnp.where((ROW == j) & (COL >= j), amat, 0.0),
                       axis=0, keepdims=True)                       # A[j, :], cols >= j
        djj = jnp.sum(jnp.where(rcol == j, colj, 0.0),
                      axis=0, keepdims=True)                        # A[j, j]
        inv_sqrt = jax.lax.rsqrt(djj)                               # 1 / L[j, j]
        lcol = colj * inv_sqrt                                      # column j of L
        lrow = rowj * inv_sqrt
        amat = amat - lcol * lrow                                   # Schur complement
        u = (lcol - (rcol == j).astype(f32)) * inv_sqrt
        xrowj = jnp.sum(jnp.where(ROW == j, x_inv, 0.0),
                        axis=0, keepdims=True)                      # x_inv[j, :]
        x_inv = x_inv - u * xrowj                                   # fold L_j^{-1} in

    # --- single post-Cholesky matmul: Xinv @ [phi^T | Tphi^T]  (4x4 @ 4x2N) ---
    pcat = jnp.concatenate([phit, tphit], axis=1)                   # (NE, 2N), lane-aligned
    ab = jnp.dot(x_inv, pcat, preferred_element_type=f32)           # (NE, 2N)
    a = ab[:, 0:n]                                                  # Xinv @ phi^T
    b = ab[:, n:2 * n]                                              # Xinv @ Tphi^T

    # eigvals_i = diag(Xinv pi Xinv^T)_i = (1/N) sum_m a[i,m] * b[i,m]
    eig_col = jnp.sum(a * b, axis=1, keepdims=True) * inv_n         # (NE, 1)
    ltrace = jnp.sum(tw * eig_col, axis=0, keepdims=True)           # (1, 1)

    # residuals^T = Xinv Tphi^T - diag(eig) Xinv phi^T ; mean over batch of sq.
    rt = b - eig_col * a                                            # (NE, N)
    lres = jnp.sum(rt * rt, axis=1, keepdims=True) * inv_n          # (NE, 1)

    # --- merged output column: [loss_trace; loss_residuals]  (NE+1, 1) ---
    # Assembled with an iota mask + tiny down-shift matmul (no sublane-offset
    # concatenate, keeps lowering on proven op types).
    r5 = jax.lax.broadcasted_iota(jnp.int32, (ne + 1, 1), 0)
    rsh = jax.lax.broadcasted_iota(jnp.int32, (ne + 1, ne), 0)
    csh = jax.lax.broadcasted_iota(jnp.int32, (ne + 1, ne), 1)
    shift_down = (rsh == csh + 1).astype(f32)                       # (NE+1, NE)
    out_ref[...] = ((r5 == 0).astype(f32) * ltrace
                    + jnp.dot(shift_down, lres, preferred_element_type=f32))


# ---------------------------------------------------------------------------
# Wrapper: layout plumbing (feature-major, packed params) + one pallas_call.
# ---------------------------------------------------------------------------
def spinx_operator_forward(x, params, trace_weights):
    w1, b1, w2, b2 = params
    n, d_in = x.shape
    hidden = w1.shape[1]
    neigs = w2.shape[1]

    # Batch on the lane axis; all small params packed into ONE padded array so
    # the kernel sees 2 input DMAs instead of 6.  (In a training loop the
    # packing can be hoisted out of the step and done once.)
    xt = x.T                                                    # (D_IN, N)
    ncols = max(d_in + 1, hidden + 2)
    top = jnp.concatenate([w1.T, b1.reshape(hidden, 1)], axis=1)           # (H, D+1)
    top = jnp.pad(top, ((0, 0), (0, ncols - (d_in + 1))))
    bot = jnp.concatenate([w2.T, b2.reshape(neigs, 1),
                           trace_weights.reshape(neigs, 1)], axis=1)       # (NE, H+2)
    bot = jnp.pad(bot, ((0, 0), (0, ncols - (hidden + 2))))
    packed = jnp.concatenate([top, bot], axis=0)                # (H+NE, ncols)

    kernel = functools.partial(_spinx_fused_kernel, d_in=d_in, hidden=hidden,
                               neigs=neigs, inv_n=1.0 / n)
    out = pl.pallas_call(
        kernel,
        out_shape=jax.ShapeDtypeStruct((neigs + 1, 1), jnp.float32),
        in_specs=[pl.BlockSpec(memory_space=pltpu.MemorySpace.VMEM),
                  pl.BlockSpec(memory_space=pltpu.MemorySpace.VMEM)],
        out_specs=pl.BlockSpec(memory_space=pltpu.MemorySpace.VMEM),
    )(xt, packed)

    # losses = hstack([loss_trace, loss_residuals]) -> (neigs + 1,)
    return out.reshape(neigs + 1)


# ---------------------------------------------------------------------------
# Pure-JAX reference for correctness checking (mirrors the PyTorch module).
# ---------------------------------------------------------------------------
def _reference_forward(x, params, trace_weights):
    w1, b1, w2, b2 = params
    h = jnp.tanh(x @ w1 + b1)
    phi = h @ w2 + b2
    v = jnp.sum(x * x, axis=1, keepdims=True)
    tphi = v * phi
    n = x.shape[0]
    sigma = phi.T @ phi / n
    pi = phi.T @ tphi / n
    chol = jnp.linalg.cholesky(sigma)
    chol_inv = jax.scipy.linalg.solve_triangular(
        chol, jnp.eye(phi.shape[1], dtype=jnp.float32), lower=True)
    lam = chol_inv @ pi @ chol_inv.T
    eig = jnp.diag(lam)
    loss_trace = jnp.sum(trace_weights * eig)
    residuals = tphi @ chol_inv.T - phi @ chol_inv.T @ jnp.diag(eig)
    loss_res = jnp.mean(residuals ** 2, axis=0)
    return jnp.concatenate([loss_trace[None], loss_res])


if __name__ == "__main__":
    key = jax.random.PRNGKey(0)
    kx, k1, k2, k3, k4 = jax.random.split(key, 5)

    # deterministic example input and synthetic "model" parameters
    x = jax.random.normal(kx, (N, D_IN), dtype=jnp.float32)
    w1 = 0.5 * jax.random.normal(k1, (D_IN, HIDDEN), dtype=jnp.float32)
    b1 = 0.1 * jax.random.normal(k2, (1, HIDDEN), dtype=jnp.float32)
    w2 = 0.5 * jax.random.normal(k3, (HIDDEN, NEIGS), dtype=jnp.float32)
    b2 = 0.1 * jax.random.normal(k4, (1, NEIGS), dtype=jnp.float32)
    trace_weights = jnp.ones((NEIGS,), dtype=jnp.float32)   # nn.Parameter(ones)

    losses = jax.jit(spinx_operator_forward)(x, (w1, b1, w2, b2), trace_weights)
    losses = jax.block_until_ready(losses)

    assert losses.shape == (NEIGS + 1,)
    assert bool(jnp.all(jnp.isfinite(losses)))

    ref = _reference_forward(x, (w1, b1, w2, b2), trace_weights)
    assert bool(jnp.allclose(losses, ref, rtol=2e-2, atol=2e-2)), (losses, ref)

    print("KERNEL_OK")
</pallas_src>

<mosaic_0001>
module attributes {stable_mosaic.version = 11 : i64} {
  func.func @_spinx_fused_kernel(%arg0: memref<8x128xf32, #tpu.memory_space<vmem>>, %arg1: memref<36x34xf32, #tpu.memory_space<vmem>>, %arg2: memref<5x1xf32, #tpu.memory_space<vmem>>) attributes {dimension_semantics = [], scalar_prefetch = 0 : i64, scratch_operands = 0 : i64, tpu.core_type = #tpu.core_type<tc>} {
    %c0 = arith.constant 0 : index
    %c0_0 = arith.constant 0 : index
    %0 = vector.load %arg1[%c0, %c0_0] : memref<36x34xf32, #tpu.memory_space<vmem>>, vector<36x34xf32>
    %1 = vector.extract_strided_slice %0 {offsets = [0, 0], sizes = [32, 8], strides = [1, 1]} : vector<36x34xf32> to vector<32x8xf32>
    %2 = vector.extract_strided_slice %0 {offsets = [0, 8], sizes = [32, 1], strides = [1, 1]} : vector<36x34xf32> to vector<32x1xf32>
    %3 = vector.extract_strided_slice %0 {offsets = [32, 0], sizes = [4, 32], strides = [1, 1]} : vector<36x34xf32> to vector<4x32xf32>
    %4 = vector.extract_strided_slice %0 {offsets = [32, 32], sizes = [4, 1], strides = [1, 1]} : vector<36x34xf32> to vector<4x1xf32>
    %5 = vector.extract_strided_slice %0 {offsets = [32, 33], sizes = [4, 1], strides = [1, 1]} : vector<36x34xf32> to vector<4x1xf32>
    %c0_1 = arith.constant 0 : index
    %c0_2 = arith.constant 0 : index
    %6 = vector.load %arg0[%c0_1, %c0_2] : memref<8x128xf32, #tpu.memory_space<vmem>>, vector<8x128xf32>
    %cst = arith.constant dense<0.000000e+00> : vector<32x128xf32>
    %7 = tpu.matmul %1, %6, %cst {dimension_numbers = #tpu.dot_dimension_numbers<[1], [0], [0], [1], [0, 0, 1, 1], [], []>} : vector<32x8xf32>, vector<8x128xf32>, vector<32x128xf32> -> vector<32x128xf32>
    %8 = vector.broadcast %2 : vector<32x1xf32> to vector<32x128xf32>
    %9 = arith.addf %7, %8 : vector<32x128xf32>
    %10 = math.tanh %9 : vector<32x128xf32>
    %cst_3 = arith.constant dense<0.000000e+00> : vector<4x128xf32>
    %11 = tpu.matmul %3, %10, %cst_3 {dimension_numbers = #tpu.dot_dimension_numbers<[1], [0], [0], [1], [0, 0, 1, 1], [], []>} : vector<4x32xf32>, vector<32x128xf32>, vector<4x128xf32> -> vector<4x128xf32>
    %12 = vector.broadcast %4 : vector<4x1xf32> to vector<4x128xf32>
    %13 = arith.addf %11, %12 : vector<4x128xf32>
    %14 = arith.mulf %6, %6 : vector<8x128xf32>
    %cst_4 = arith.constant dense<0.000000e+00> : vector<128xf32>
    %15 = vector.multi_reduction <add>, %14, %cst_4 [0] : vector<8x128xf32> to vector<128xf32>
    %16 = vector.shape_cast %15 : vector<128xf32> to vector<1x128xf32>
    %17 = vector.broadcast %16 : vector<1x128xf32> to vector<4x128xf32>
    %18 = arith.mulf %17, %13 : vector<4x128xf32>
    %19 = tpu.transpose %13, [1, 0] : vector<4x128xf32> -> vector<128x4xf32>
    %cst_5 = arith.constant dense<0.000000e+00> : vector<4x4xf32>
    %20 = tpu.matmul %13, %19, %cst_5 {dimension_numbers = #tpu.dot_dimension_numbers<[1], [0], [0], [1], [0, 0, 1, 1], [], []>} : vector<4x128xf32>, vector<128x4xf32>, vector<4x4xf32> -> vector<4x4xf32>
    %cst_6 = arith.constant 7.812500e-03 : f32
    %21 = vector.broadcast %cst_6 : f32 to vector<4x4xf32>
    %22 = arith.mulf %20, %21 : vector<4x4xf32>
    %23 = tpu.iota {dimensions = array<i32: 0>} : vector<4x4xi32>
    %24 = tpu.iota {dimensions = array<i32: 1>} : vector<4x4xi32>
    %25 = tpu.iota {dimensions = array<i32: 0>} : vector<4x1xi32>
    %26 = arith.cmpi eq, %23, %24 : vector<4x4xi32>
    %27 = arith.extui %26 : vector<4x4xi1> to vector<4x4xi32>
    %28 = arith.sitofp %27 : vector<4x4xi32> to vector<4x4xf32>
    %c0_i32 = arith.constant 0 : i32
    %29 = vector.broadcast %c0_i32 : i32 to vector<4x4xi32>
    %30 = arith.cmpi eq, %24, %29 : vector<4x4xi32>
    %c0_i32_7 = arith.constant 0 : i32
    %31 = vector.broadcast %c0_i32_7 : i32 to vector<4x4xi32>
    %32 = arith.cmpi sge, %23, %31 : vector<4x4xi32>
    %33 = arith.andi %30, %32 : vector<4x4xi1>
    %cst_8 = arith.constant 0.000000e+00 : f32
    %34 = vector.broadcast %cst_8 : f32 to vector<4x4xf32>
    %35 = arith.select %33, %22, %34 : vector<4x4xi1>, vector<4x4xf32>
    %cst_9 = arith.constant dense<0.000000e+00> : vector<4xf32>
    %36 = vector.multi_reduction <add>, %35, %cst_9 [1] : vector<4x4xf32> to vector<4xf32>
    %37 = vector.shape_cast %36 : vector<4xf32> to vector<4x1xf32>
    %c0_i32_10 = arith.constant 0 : i32
    %38 = vector.broadcast %c0_i32_10 : i32 to vector<4x4xi32>
    %39 = arith.cmpi eq, %23, %38 : vector<4x4xi32>
    %c0_i32_11 = arith.constant 0 : i32
    %40 = vector.broadcast %c0_i32_11 : i32 to vector<4x4xi32>
    %41 = arith.cmpi sge, %24, %40 : vector<4x4xi32>
    %42 = arith.andi %39, %41 : vector<4x4xi1>
    %cst_12 = arith.constant 0.000000e+00 : f32
    %43 = vector.broadcast %cst_12 : f32 to vector<4x4xf32>
    %44 = arith.select %42, %22, %43 : vector<4x4xi1>, vector<4x4xf32>
    %cst_13 = arith.constant dense<0.000000e+00> : vector<4xf32>
    %45 = vector.multi_reduction <add>, %44, %cst_13 [0] : vector<4x4xf32> to vector<4xf32>
    %46 = vector.shape_cast %45 : vector<4xf32> to vector<1x4xf32>
    %c0_i32_14 = arith.constant 0 : i32
    %47 = vector.broadcast %c0_i32_14 : i32 to vector<4x1xi32>
    %48 = arith.cmpi eq, %25, %47 : vector<4x1xi32>
    %cst_15 = arith.constant 0.000000e+00 : f32
    %49 = vector.broadcast %cst_15 : f32 to vector<4x1xf32>
    %50 = arith.select %48, %37, %49 : vector<4x1xi1>, vector<4x1xf32>
    %cst_16 = arith.constant dense<0.000000e+00> : vector<1xf32>
    %51 = vector.multi_reduction <add>, %50, %cst_16 [0] : vector<4x1xf32> to vector<1xf32>
    %52 = vector.shape_cast %51 : vector<1xf32> to vector<1x1xf32>
    %53 = math.rsqrt %52 : vector<1x1xf32>
    %54 = vector.broadcast %53 : vector<1x1xf32> to vector<4x1xf32>
    %55 = arith.mulf %37, %54 : vector<4x1xf32>
    %56 = vector.broadcast %53 : vector<1x1xf32> to vector<1x4xf32>
    %57 = arith.mulf %46, %56 : vector<1x4xf32>
    %58 = vector.broadcast %55 : vector<4x1xf32> to vector<4x4xf32>
    %59 = vector.broadcast %57 : vector<1x4xf32> to vector<4x4xf32>
    %60 = arith.mulf %58, %59 : vector<4x4xf32>
    %61 = arith.subf %22, %60 : vector<4x4xf32>
    %c0_i32_17 = arith.constant 0 : i32
    %62 = vector.broadcast %c0_i32_17 : i32 to vector<4x1xi32>
    %63 = arith.cmpi eq, %25, %62 : vector<4x1xi32>
    %64 = arith.extui %63 : vector<4x1xi1> to vector<4x1xi32>
    %65 = arith.sitofp %64 : vector<4x1xi32> to vector<4x1xf32>
    %66 = arith.subf %55, %65 : vector<4x1xf32>
    %67 = vector.broadcast %53 : vector<1x1xf32> to vector<4x1xf32>
    %68 = arith.mulf %66, %67 : vector<4x1xf32>
    %c0_i32_18 = arith.constant 0 : i32
    %69 = vector.broadcast %c0_i32_18 : i32 to vector<4x4xi32>
    %70 = arith.cmpi eq, %23, %69 : vector<4x4xi32>
    %cst_19 = arith.constant 0.000000e+00 : f32
    %71 = vector.broadcast %cst_19 : f32 to vector<4x4xf32>
    %72 = arith.select %70, %28, %71 : vector<4x4xi1>, vector<4x4xf32>
    %cst_20 = arith.constant dense<0.000000e+00> : vector<4xf32>
    %73 = vector.multi_reduction <add>, %72, %cst_20 [0] : vector<4x4xf32> to vector<4xf32>
    %74 = vector.shape_cast %73 : vector<4xf32> to vector<1x4xf32>
    %75 = vector.broadcast %68 : vector<4x1xf32> to vector<4x4xf32>
    %76 = vector.broadcast %74 : vector<1x4xf32> to vector<4x4xf32>
    %77 = arith.mulf %75, %76 : vector<4x4xf32>
    %78 = arith.subf %28, %77 : vector<4x4xf32>
    %c1_i32 = arith.constant 1 : i32
    %79 = vector.broadcast %c1_i32 : i32 to vector<4x4xi32>
    %80 = arith.cmpi eq, %24, %79 : vector<4x4xi32>
    %c1_i32_21 = arith.constant 1 : i32
    %81 = vector.broadcast %c1_i32_21 : i32 to vector<4x4xi32>
    %82 = arith.cmpi sge, %23, %81 : vector<4x4xi32>
    %83 = arith.andi %80, %82 : vector<4x4xi1>
    %cst_22 = arith.constant 0.000000e+00 : f32
    %84 = vector.broadcast %cst_22 : f32 to vector<4x4xf32>
    %85 = arith.select %83, %61, %84 : vector<4x4xi1>, vector<4x4xf32>
    %cst_23 = arith.constant dense<0.000000e+00> : vector<4xf32>
    %86 = vector.multi_reduction <add>, %85, %cst_23 [1] : vector<4x4xf32> to vector<4xf32>
    %87 = vector.shape_cast %86 : vector<4xf32> to vector<4x1xf32>
    %c1_i32_24 = arith.constant 1 : i32
    %88 = vector.broadcast %c1_i32_24 : i32 to vector<4x4xi32>
    %89 = arith.cmpi eq, %23, %88 : vector<4x4xi32>
    %c1_i32_25 = arith.constant 1 : i32
    %90 = vector.broadcast %c1_i32_25 : i32 to vector<4x4xi32>
    %91 = arith.cmpi sge, %24, %90 : vector<4x4xi32>
    %92 = arith.andi %89, %91 : vector<4x4xi1>
    %cst_26 = arith.constant 0.000000e+00 : f32
    %93 = vector.broadcast %cst_26 : f32 to vector<4x4xf32>
    %94 = arith.select %92, %61, %93 : vector<4x4xi1>, vector<4x4xf32>
    %cst_27 = arith.constant dense<0.000000e+00> : vector<4xf32>
    %95 = vector.multi_reduction <add>, %94, %cst_27 [0] : vector<4x4xf32> to vector<4xf32>
    %96 = vector.shape_cast %95 : vector<4xf32> to vector<1x4xf32>
    %c1_i32_28 = arith.constant 1 : i32
    %97 = vector.broadcast %c1_i32_28 : i32 to vector<4x1xi32>
    %98 = arith.cmpi eq, %25, %97 : vector<4x1xi32>
    %cst_29 = arith.constant 0.000000e+00 : f32
    %99 = vector.broadcast %cst_29 : f32 to vector<4x1xf32>
    %100 = arith.select %98, %87, %99 : vector<4x1xi1>, vector<4x1xf32>
    %cst_30 = arith.constant dense<0.000000e+00> : vector<1xf32>
    %101 = vector.multi_reduction <add>, %100, %cst_30 [0] : vector<4x1xf32> to vector<1xf32>
    %102 = vector.shape_cast %101 : vector<1xf32> to vector<1x1xf32>
    %103 = math.rsqrt %102 : vector<1x1xf32>
    %104 = vector.broadcast %103 : vector<1x1xf32> to vector<4x1xf32>
    %105 = arith.mulf %87, %104 : vector<4x1xf32>
    %106 = vector.broadcast %103 : vector<1x1xf32> to vector<1x4xf32>
    %107 = arith.mulf %96, %106 : vector<1x4xf32>
    %108 = vector.broadcast %105 : vector<4x1xf32> to vector<4x4xf32>
    %109 = vector.broadcast %107 : vector<1x4xf32> to vector<4x4xf32>
    %110 = arith.mulf %108, %109 : vector<4x4xf32>
    %111 = arith.subf %61, %110 : vector<4x4xf32>
    %c1_i32_31 = arith.constant 1 : i32
    %112 = vector.broadcast %c1_i32_31 : i32 to vector<4x1xi32>
    %113 = arith.cmpi eq, %25, %112 : vector<4x1xi32>
    %114 = arith.extui %113 : vector<4x1xi1> to vector<4x1xi32>
    %115 = arith.sitofp %114 : vector<4x1xi32> to vector<4x1xf32>
    %116 = arith.subf %105, %115 : vector<4x1xf32>
    %117 = vector.broadcast %103 : vector<1x1xf32> to vector<4x1xf32>
    %118 = arith.mulf %116, %117 : vector<4x1xf32>
    %c1_i32_32 = arith.constant 1 : i32
    %119 = vector.broadcast %c1_i32_32 : i32 to vector<4x4xi32>
    %120 = arith.cmpi eq, %23, %119 : vector<4x4xi32>
    %cst_33 = arith.constant 0.000000e+00 : f32
    %121 = vector.broadcast %cst_33 : f32 to vector<4x4xf32>
    %122 = arith.select %120, %78, %121 : vector<4x4xi1>, vector<4x4xf32>
    %cst_34 = arith.constant dense<0.000000e+00> : vector<4xf32>
    %123 = vector.multi_reduction <add>, %122, %cst_34 [0] : vector<4x4xf32> to vector<4xf32>
    %124 = vector.shape_cast %123 : vector<4xf32> to vector<1x4xf32>
    %125 = vector.broadcast %118 : vector<4x1xf32> to vector<4x4xf32>
    %126 = vector.broadcast %124 : vector<1x4xf32> to vector<4x4xf32>
    %127 = arith.mulf %125, %126 : vector<4x4xf32>
    %128 = arith.subf %78, %127 : vector<4x4xf32>
    %c2_i32 = arith.constant 2 : i32
    %129 = vector.broadcast %c2_i32 : i32 to vector<4x4xi32>
    %130 = arith.cmpi eq, %24, %129 : vector<4x4xi32>
    %c2_i32_35 = arith.constant 2 : i32
    %131 = vector.broadcast %c2_i32_35 : i32 to vector<4x4xi32>
    %132 = arith.cmpi sge, %23, %131 : vector<4x4xi32>
    %133 = arith.andi %130, %132 : vector<4x4xi1>
    %cst_36 = arith.constant 0.000000e+00 : f32
    %134 = vector.broadcast %cst_36 : f32 to vector<4x4xf32>
    %135 = arith.select %133, %111, %134 : vector<4x4xi1>, vector<4x4xf32>
    %cst_37 = arith.constant dense<0.000000e+00> : vector<4xf32>
    %136 = vector.multi_reduction <add>, %135, %cst_37 [1] : vector<4x4xf32> to vector<4xf32>
    %137 = vector.shape_cast %136 : vector<4xf32> to vector<4x1xf32>
    %c2_i32_38 = arith.constant 2 : i32
    %138 = vector.broadcast %c2_i32_38 : i32 to vector<4x4xi32>
    %139 = arith.cmpi eq, %23, %138 : vector<4x4xi32>
    %c2_i32_39 = arith.constant 2 : i32
    %140 = vector.broadcast %c2_i32_39 : i32 to vector<4x4xi32>
    %141 = arith.cmpi sge, %24, %140 : vector<4x4xi32>
    %142 = arith.andi %139, %141 : vector<4x4xi1>
    %cst_40 = arith.constant 0.000000e+00 : f32
    %143 = vector.broadcast %cst_40 : f32 to vector<4x4xf32>
    %144 = arith.select %142, %111, %143 : vector<4x4xi1>, vector<4x4xf32>
    %cst_41 = arith.constant dense<0.000000e+00> : vector<4xf32>
    %145 = vector.multi_reduction <add>, %144, %cst_41 [0] : vector<4x4xf32> to vector<4xf32>
    %146 = vector.shape_cast %145 : vector<4xf32> to vector<1x4xf32>
    %c2_i32_42 = arith.constant 2 : i32
    %147 = vector.broadcast %c2_i32_42 : i32 to vector<4x1xi32>
    %148 = arith.cmpi eq, %25, %147 : vector<4x1xi32>
    %cst_43 = arith.constant 0.000000e+00 : f32
    %149 = vector.broadcast %cst_43 : f32 to vector<4x1xf32>
    %150 = arith.select %148, %137, %149 : vector<4x1xi1>, vector<4x1xf32>
    %cst_44 = arith.constant dense<0.000000e+00> : vector<1xf32>
    %151 = vector.multi_reduction <add>, %150, %cst_44 [0] : vector<4x1xf32> to vector<1xf32>
    %152 = vector.shape_cast %151 : vector<1xf32> to vector<1x1xf32>
    %153 = math.rsqrt %152 : vector<1x1xf32>
    %154 = vector.broadcast %153 : vector<1x1xf32> to vector<4x1xf32>
    %155 = arith.mulf %137, %154 : vector<4x1xf32>
    %156 = vector.broadcast %153 : vector<1x1xf32> to vector<1x4xf32>
    %157 = arith.mulf %146, %156 : vector<1x4xf32>
    %158 = vector.broadcast %155 : vector<4x1xf32> to vector<4x4xf32>
    %159 = vector.broadcast %157 : vector<1x4xf32> to vector<4x4xf32>
    %160 = arith.mulf %158, %159 : vector<4x4xf32>
    %161 = arith.subf %111, %160 : vector<4x4xf32>
    %c2_i32_45 = arith.constant 2 : i32
    %162 = vector.broadcast %c2_i32_45 : i32 to vector<4x1xi32>
    %163 = arith.cmpi eq, %25, %162 : vector<4x1xi32>
    %164 = arith.extui %163 : vector<4x1xi1> to vector<4x1xi32>
    %165 = arith.sitofp %164 : vector<4x1xi32> to vector<4x1xf32>
    %166 = arith.subf %155, %165 : vector<4x1xf32>
    %167 = vector.broadcast %153 : vector<1x1xf32> to vector<4x1xf32>
    %168 = arith.mulf %166, %167 : vector<4x1xf32>
    %c2_i32_46 = arith.constant 2 : i32
    %169 = vector.broadcast %c2_i32_46 : i32 to vector<4x4xi32>
    %170 = arith.cmpi eq, %23, %169 : vector<4x4xi32>
    %cst_47 = arith.constant 0.000000e+00 : f32
    %171 = vector.broadcast %cst_47 : f32 to vector<4x4xf32>
    %172 = arith.select %170, %128, %171 : vector<4x4xi1>, vector<4x4xf32>
    %cst_48 = arith.constant dense<0.000000e+00> : vector<4xf32>
    %173 = vector.multi_reduction <add>, %172, %cst_48 [0] : vector<4x4xf32> to vector<4xf32>
    %174 = vector.shape_cast %173 : vector<4xf32> to vector<1x4xf32>
    %175 = vector.broadcast %168 : vector<4x1xf32> to vector<4x4xf32>
    %176 = vector.broadcast %174 : vector<1x4xf32> to vector<4x4xf32>
    %177 = arith.mulf %175, %176 : vector<4x4xf32>
    %178 = arith.subf %128, %177 : vector<4x4xf32>
    %c3_i32 = arith.constant 3 : i32
    %179 = vector.broadcast %c3_i32 : i32 to vector<4x4xi32>
    %180 = arith.cmpi eq, %24, %179 : vector<4x4xi32>
    %c3_i32_49 = arith.constant 3 : i32
    %181 = vector.broadcast %c3_i32_49 : i32 to vector<4x4xi32>
    %182 = arith.cmpi sge, %23, %181 : vector<4x4xi32>
    %183 = arith.andi %180, %182 : vector<4x4xi1>
    %cst_50 = arith.constant 0.000000e+00 : f32
    %184 = vector.broadcast %cst_50 : f32 to vector<4x4xf32>
    %185 = arith.select %183, %161, %184 : vector<4x4xi1>, vector<4x4xf32>
    %cst_51 = arith.constant dense<0.000000e+00> : vector<4xf32>
    %186 = vector.multi_reduction <add>, %185, %cst_51 [1] : vector<4x4xf32> to vector<4xf32>
    %187 = vector.shape_cast %186 : vector<4xf32> to vector<4x1xf32>
    %c3_i32_52 = arith.constant 3 : i32
    %188 = vector.broadcast %c3_i32_52 : i32 to vector<4x1xi32>
    %189 = arith.cmpi eq, %25, %188 : vector<4x1xi32>
    %cst_53 = arith.constant 0.000000e+00 : f32
    %190 = vector.broadcast %cst_53 : f32 to vector<4x1xf32>
    %191 = arith.select %189, %187, %190 : vector<4x1xi1>, vector<4x1xf32>
    %cst_54 = arith.constant dense<0.000000e+00> : vector<1xf32>
    %192 = vector.multi_reduction <add>, %191, %cst_54 [0] : vector<4x1xf32> to vector<1xf32>
    %193 = vector.shape_cast %192 : vector<1xf32> to vector<1x1xf32>
    %194 = math.rsqrt %193 : vector<1x1xf32>
    %195 = vector.broadcast %194 : vector<1x1xf32> to vector<4x1xf32>
    %196 = arith.mulf %187, %195 : vector<4x1xf32>
    %c3_i32_55 = arith.constant 3 : i32
    %197 = vector.broadcast %c3_i32_55 : i32 to vector<4x1xi32>
    %198 = arith.cmpi eq, %25, %197 : vector<4x1xi32>
    %199 = arith.extui %198 : vector<4x1xi1> to vector<4x1xi32>
    %200 = arith.sitofp %199 : vector<4x1xi32> to vector<4x1xf32>
    %201 = arith.subf %196, %200 : vector<4x1xf32>
    %202 = vector.broadcast %194 : vector<1x1xf32> to vector<4x1xf32>
    %203 = arith.mulf %201, %202 : vector<4x1xf32>
    %c3_i32_56 = arith.constant 3 : i32
    %204 = vector.broadcast %c3_i32_56 : i32 to vector<4x4xi32>
    %205 = arith.cmpi eq, %23, %204 : vector<4x4xi32>
    %cst_57 = arith.constant 0.000000e+00 : f32
    %206 = vector.broadcast %cst_57 : f32 to vector<4x4xf32>
    %207 = arith.select %205, %178, %206 : vector<4x4xi1>, vector<4x4xf32>
    %cst_58 = arith.constant dense<0.000000e+00> : vector<4xf32>
    %208 = vector.multi_reduction <add>, %207, %cst_58 [0] : vector<4x4xf32> to vector<4xf32>
    %209 = vector.shape_cast %208 : vector<4xf32> to vector<1x4xf32>
    %210 = vector.broadcast %203 : vector<4x1xf32> to vector<4x4xf32>
    %211 = vector.broadcast %209 : vector<1x4xf32> to vector<4x4xf32>
    %212 = arith.mulf %210, %211 : vector<4x4xf32>
    %213 = arith.subf %178, %212 : vector<4x4xf32>
    %214 = tpu.concatenate %13, %18 in 1 : vector<4x128xf32>, vector<4x128xf32> -> vector<4x256xf32>
    %cst_59 = arith.constant dense<0.000000e+00> : vector<4x256xf32>
    %215 = tpu.matmul %213, %214, %cst_59 {dimension_numbers = #tpu.dot_dimension_numbers<[1], [0], [0], [1], [0, 0, 1, 1], [], []>} : vector<4x4xf32>, vector<4x256xf32>, vector<4x256xf32> -> vector<4x256xf32>
    %216 = vector.extract_strided_slice %215 {offsets = [0, 0], sizes = [4, 128], strides = [1, 1]} : vector<4x256xf32> to vector<4x128xf32>
    %217 = vector.extract_strided_slice %215 {offsets = [0, 128], sizes = [4, 128], strides = [1, 1]} : vector<4x256xf32> to vector<4x128xf32>
    %218 = arith.mulf %216, %217 : vector<4x128xf32>
    %cst_60 = arith.constant dense<0.000000e+00> : vector<4xf32>
    %219 = vector.multi_reduction <add>, %218, %cst_60 [1] : vector<4x128xf32> to vector<4xf32>
    %220 = vector.shape_cast %219 : vector<4xf32> to vector<4x1xf32>
    %cst_61 = arith.constant 7.812500e-03 : f32
    %221 = vector.broadcast %cst_61 : f32 to vector<4x1xf32>
    %222 = arith.mulf %220, %221 : vector<4x1xf32>
    %223 = arith.mulf %5, %222 : vector<4x1xf32>
    %cst_62 = arith.constant dense<0.000000e+00> : vector<1xf32>
    %224 = vector.multi_reduction <add>, %223, %cst_62 [0] : vector<4x1xf32> to vector<1xf32>
    %225 = vector.shape_cast %224 : vector<1xf32> to vector<1x1xf32>
    %226 = vector.broadcast %222 : vector<4x1xf32> to vector<4x128xf32>
    %227 = arith.mulf %226, %216 : vector<4x128xf32>
    %228 = arith.subf %217, %227 : vector<4x128xf32>
    %229 = arith.mulf %228, %228 : vector<4x128xf32>
    %cst_63 = arith.constant dense<0.000000e+00> : vector<4xf32>
    %230 = vector.multi_reduction <add>, %229, %cst_63 [1] : vector<4x128xf32> to vector<4xf32>
    %231 = vector.shape_cast %230 : vector<4xf32> to vector<4x1xf32>
    %cst_64 = arith.constant 7.812500e-03 : f32
    %232 = vector.broadcast %cst_64 : f32 to vector<4x1xf32>
    %233 = arith.mulf %231, %232 : vector<4x1xf32>
    %234 = tpu.iota {dimensions = array<i32: 0>} : vector<5x1xi32>
    %235 = tpu.iota {dimensions = array<i32: 0>} : vector<5x4xi32>
    %236 = tpu.iota {dimensions = array<i32: 1>} : vector<5x4xi32>
    %c1_i32_65 = arith.constant 1 : i32
    %237 = vector.broadcast %c1_i32_65 : i32 to vector<5x4xi32>
    %238 = arith.addi %236, %237 : vector<5x4xi32>
    %239 = arith.cmpi eq, %235, %238 : vector<5x4xi32>
    %240 = arith.extui %239 : vector<5x4xi1> to vector<5x4xi32>
    %241 = arith.sitofp %240 : vector<5x4xi32> to vector<5x4xf32>
    %c0_i32_66 = arith.constant 0 : i32
    %242 = vector.broadcast %c0_i32_66 : i32 to vector<5x1xi32>
    %243 = arith.cmpi eq, %234, %242 : vector<5x1xi32>
    %244 = arith.extui %243 : vector<5x1xi1> to vector<5x1xi32>
    %245 = arith.sitofp %244 : vector<5x1xi32> to vector<5x1xf32>
    %246 = vector.broadcast %225 : vector<1x1xf32> to vector<5x1xf32>
    %247 = arith.mulf %245, %246 : vector<5x1xf32>
    %cst_67 = arith.constant dense<0.000000e+00> : vector<5x1xf32>
    %248 = tpu.matmul %241, %233, %cst_67 {dimension_numbers = #tpu.dot_dimension_numbers<[1], [0], [0], [1], [0, 0, 1, 1], [], []>} : vector<5x4xf32>, vector<4x1xf32>, vector<5x1xf32> -> vector<5x1xf32>
    %249 = arith.addf %247, %248 : vector<5x1xf32>
    %c0_68 = arith.constant 0 : index
    %c0_69 = arith.constant 0 : index
    %250 = vector.load %arg2[%c0_68, %c0_69] : memref<5x1xf32, #tpu.memory_space<vmem>>, vector<5x1xf32>
    tpu.vector_store %arg2[%c0_68, %c0_69], %249 {strides = array<i32>} : memref<5x1xf32, #tpu.memory_space<vmem>>, vector<5x1xf32>,
    return
  }
}

</mosaic_0001>

<llo_original>
// kernel: spinx_operator_forward.1
$region0: #{spinx_operator_forward.1}
  #allocation0 [shape = 'u32[]', space=smem, size = 0x4, offset = 0x4, fixed_abs, tag = 'smem constant byte address 0x4 - core index']
  #allocation1 [shape = 'u32[144,128]{1,0:T(1,128)}', space=vmem, size = 0x12000, scoped, tag = 'internal scratch']
  %s0 = inlined_call_operand.vmem [shape: f32[8,128], index: 0, kind: input, shape index: {}]
  %s1 = inlined_call_operand.vmem [shape: f32[36,34], index: 1, kind: input, shape index: {}]
  %s2 = inlined_call_operand.vmem [shape: f32[5,1], index: 2, kind: output, shape index: {}]
  %s3 = sld [smem:[#allocation0]]
  $region18: #{spinx_operator_forward.1} parent=0
    _
  %s5 = ssub.s32 1, %s3
  %s6 = scalar_select 0, %s5, %s3
  // Predicated region
  $region2: #{spinx_operator_forward.1} parent=0 // pred_check
    _
  $region3: #{spinx_operator_forward.1} parent=0 // pred_check_branch
    %8 = sbr.rel (0) target = $region5
  $region4: #{spinx_operator_forward.1} parent=0 // pred_region
    _
  $region5: #{spinx_operator_forward.1} parent=0 // pred_fallthru
    _
  // Predicated region
  $region6: #{spinx_operator_forward.1} parent=0 // pred_check
    _
  $region7: #{spinx_operator_forward.1} parent=0 // pred_check_branch
    %10 = sbr.rel (0) target = $region9
  $region8: #{spinx_operator_forward.1} parent=0 // pred_region
    _
  $region9: #{spinx_operator_forward.1} parent=0 // pred_fallthru
    _
  %v11 = vld [vmem:[%s1] sm:$0xff]
  %v12 = vld [vmem:[%s1 + $0x8] sm:$0xff]
  %v13 = vld [vmem:[%s1 + $0x10] sm:$0xff]
  %v14 = vld [vmem:[%s1 + $0x18] sm:$0xff]
  %v15 = vld [vmem:[%s1 + $0x20] sm:$0xf]
  %v16 = vld [vmem:[%s0] sm:$0xff]
  %18 = vset.pattern.permute.xlu0 8
  %19 = vperm.xlu0 %18, %v11
  %v20 = vpop.permute.xlu0 %19
  %23 = vset.pattern.permute.xlu0 8
  %24 = vperm.xlu0 %23, %v12
  %v25 = vpop.permute.xlu0 %24
  %28 = vset.pattern.permute.xlu0 8
  %29 = vperm.xlu0 %28, %v13
  %v30 = vpop.permute.xlu0 %29
  %33 = vset.pattern.permute.xlu0 8
  %34 = vperm.xlu0 %33, %v14
  %v35 = vpop.permute.xlu0 %34
  %vm37 = vcmask 64512
  %v38 = vsel %vm37, %v11, 0
  %v40 = vsel %vm37, %v12, 0
  %v42 = vsel %vm37, %v13, 0
  %v44 = vsel %vm37, %v14, 0
  %46 = vmatprep.subr.mxu0 0.0
  %47 = vmatpush1.msra.mxu0 %v16
  %48 = vmatprep.subr.mxu0 0.0
  %49 = vmatpush1.msra.mxu0 0.0
  %50 = vmatprep.subr.mxu0 0.0
  %51 = vmatpush1.msra.mxu0 0.0
  %52 = vmatprep.subr.mxu0 0.0
  %53 = vmatpush1.msra.mxu0 0.0
  %54 = vmatprep.subr.mxu0 0.0
  %55 = vmatpush1.msra.mxu0 0.0
  %56 = vmatprep.subr.mxu0 0.0
  %57 = vmatpush1.msra.mxu0 0.0
  %58 = vmatprep.subr.mxu0 0.0
  %59 = vmatpush1.msra.mxu0 0.0
  %60 = vmatprep.subr.mxu0 0.0
  %61 = vmatpush1.msra.mxu0 0.0
  %62 = vmatprep.subr.mxu0 0.0
  %63 = vmatpush1.msra.mxu0 0.0
  %64 = vmatprep.subr.mxu0 0.0
  %65 = vmatpush1.msra.mxu0 0.0
  %66 = vmatprep.subr.mxu0 0.0
  %67 = vmatpush1.msra.mxu0 0.0
  %68 = vmatprep.subr.mxu0 0.0
  %69 = vmatpush1.msra.mxu0 0.0
  %70 = vmatprep.subr.mxu0 0.0
  %71 = vmatpush1.msra.mxu0 0.0
  %72 = vmatprep.subr.mxu0 0.0
  %73 = vmatpush1.msra.mxu0 0.0
  %74 = vmatprep.subr.mxu0 0.0
  %75 = vmatpush1.msra.mxu0 0.0
  %76 = vmatprep.subr.mxu0 0.0
  %77 = vmatpush1.msra.mxu0 0.0
  %78 = vmatprep.subr.mxu0 0.0
  %79 = vmatpush1.msra.mxu0 0.0
  %80 = vmatprep.subr.mxu0 0.0
  %81 = vmatpush1.msra.mxu0 0.0
  %82 = vmatprep.subr.mxu0 0.0
  %83 = vmatpush1.msra.mxu0 0.0
  %84 = vmatprep.subr.mxu0 0.0
  %85 = vmatpush1.msra.mxu0 0.0
  %86 = vmatprep.subr.mxu0 0.0
  %87 = vmatpush1.msra.mxu0 0.0
  %88 = vmatprep.subr.mxu0 0.0
  %89 = vmatpush1.msra.mxu0 0.0
  %90 = vmatprep.subr.mxu0 0.0
  %91 = vmatpush1.msra.mxu0 0.0
  %92 = vmatprep.subr.mxu0 0.0
  %93 = vmatpush1.msra.mxu0 0.0
  %94 = vmatprep.subr.mxu0 0.0
  %95 = vmatpush1.msra.mxu0 0.0
  %96 = vmatprep.subr.mxu0 0.0
  %97 = vmatpush1.msra.mxu0 0.0
  %98 = vmatprep.subr.mxu0 0.0
  %99 = vmatpush1.msra.mxu0 0.0
  %100 = vmatprep.subr.mxu0 0.0
  %101 = vmatpush1.msra.mxu0 0.0
  %102 = vmatprep.subr.mxu0 0.0
  %103 = vmatpush1.msra.mxu0 0.0
  %104 = vmatprep.subr.mxu0 0.0
  %105 = vmatpush1.msra.mxu0 0.0
  %106 = vmatprep.subr.mxu0 0.0
  %107 = vmatpush1.msra.mxu0 0.0
  %108 = vmatprep.subr.mxu0 0.0
  %109 = vmatpush1.msra.mxu0 0.0
  %110 = vmatprep.mubr.f32.mxu0 0.0
  %111 = vmatmul.mubr.f32.gmra.mrb[0].mxu0 %v38
  %v112 = vpop.f32.mrb[0].mxu0
  %v113 = vadd.f32 %v20, %v112
  %v114 = vpop.f32.mrb[0].mxu0
  %115 = vmatprep.mubr.f32.mxu0 0.0
  %116 = vmatmul.mubr.f32.gmra.mrb[0].mxu0 %v40
  %v117 = vpop.f32.mrb[0].mxu0
  %v118 = vadd.f32 %v25, %v117
  %v119 = vpop.f32.mrb[0].mxu0
  %120 = vmatprep.mubr.f32.mxu0 0.0
  %121 = vmatmul.mubr.f32.gmra.mrb[0].mxu0 %v42
  %v122 = vpop.f32.mrb[0].mxu0
  %v123 = vadd.f32 %v30, %v122
  %v124 = vpop.f32.mrb[0].mxu0
  %125 = vmatprep.mubr.f32.mxu0 0.0
  %126 = vmatmul.mubr.f32.gmra.mrb[0].mxu0 %v44
  %v127 = vpop.f32.mrb[0].mxu0
  %v128 = vadd.f32 %v35, %v127
  %v129 = vpop.f32.mrb[0].mxu0
  %130 = vdwg.mxu0
  %v131 = vtanh.pop %v113
  %v132 = vtanh.pop %v118
  %v133 = vtanh.pop %v123
  %v134 = vtanh.pop %v128
  %136 = vset.pattern.permute.xlu0 32
  %137 = vperm.xlu0 %136, %v15
  %v138 = vpop.permute.xlu0 %137
  %vm140 = vcmask 261120
  %v141 = vsel %vm140, %v15, 0
  %143 = vmatprep.subr.mxu0 0.0
  %144 = vmatpush1.msra.mxu0 %v131
  %145 = vmatprep.subr.mxu0 0.0
  %146 = vmatpush1.msra.mxu0 %v132
  %147 = vmatprep.subr.mxu0 0.0
  %148 = vmatpush1.msra.mxu0 %v133
  %149 = vmatprep.subr.mxu0 0.0
  %150 = vmatpush1.msra.mxu0 %v134
  %151 = vmatprep.subr.mxu0 0.0
  %152 = vmatpush1.msra.mxu0 0.0
  %153 = vmatprep.subr.mxu0 0.0
  %154 = vmatpush1.msra.mxu0 0.0
  %155 = vmatprep.subr.mxu0 0.0
  %156 = vmatpush1.msra.mxu0 0.0
  %157 = vmatprep.subr.mxu0 0.0
  %158 = vmatpush1.msra.mxu0 0.0
  %159 = vmatprep.subr.mxu0 0.0
  %160 = vmatpush1.msra.mxu0 0.0
  %161 = vmatprep.subr.mxu0 0.0
  %162 = vmatpush1.msra.mxu0 0.0
  %163 = vmatprep.subr.mxu0 0.0
  %164 = vmatpush1.msra.mxu0 0.0
  %165 = vmatprep.subr.mxu0 0.0
  %166 = vmatpush1.msra.mxu0 0.0
  %167 = vmatprep.subr.mxu0 0.0
  %168 = vmatpush1.msra.mxu0 0.0
  %169 = vmatprep.subr.mxu0 0.0
  %170 = vmatpush1.msra.mxu0 0.0
  %171 = vmatprep.subr.mxu0 0.0
  %172 = vmatpush1.msra.mxu0 0.0
  %173 = vmatprep.subr.mxu0 0.0
  %174 = vmatpush1.msra.mxu0 0.0
  %175 = vmatprep.subr.mxu0 0.0
  %176 = vmatpush1.msra.mxu0 0.0
  %177 = vmatprep.subr.mxu0 0.0
  %178 = vmatpush1.msra.mxu0 0.0
  %179 = vmatprep.subr.mxu0 0.0
  %180 = vmatpush1.msra.mxu0 0.0
  %181 = vmatprep.subr.mxu0 0.0
  %182 = vmatpush1.msra.mxu0 0.0
  %183 = vmatprep.subr.mxu0 0.0
  %184 = vmatpush1.msra.mxu0 0.0
  %185 = vmatprep.subr.mxu0 0.0
  %186 = vmatpush1.msra.mxu0 0.0
  %187 = vmatprep.subr.mxu0 0.0
  %188 = vmatpush1.msra.mxu0 0.0
  %189 = vmatprep.subr.mxu0 0.0
  %190 = vmatpush1.msra.mxu0 0.0
  %191 = vmatprep.subr.mxu0 0.0
  %192 = vmatpush1.msra.mxu0 0.0
  %193 = vmatprep.subr.mxu0 0.0
  %194 = vmatpush1.msra.mxu0 0.0
  %195 = vmatprep.subr.mxu0 0.0
  %196 = vmatpush1.msra.mxu0 0.0
  %197 = vmatprep.subr.mxu0 0.0
  %198 = vmatpush1.msra.mxu0 0.0
  %199 = vmatprep.subr.mxu0 0.0
  %200 = vmatpush1.msra.mxu0 0.0
  %201 = vmatprep.subr.mxu0 0.0
  %202 = vmatpush1.msra.mxu0 0.0
  %203 = vmatprep.subr.mxu0 0.0
  %204 = vmatpush1.msra.mxu0 0.0
  %205 = vmatprep.subr.mxu0 0.0
  %206 = vmatpush1.msra.mxu0 0.0
  %207 = vmatprep.mubr.f32.mxu0 0.0
  %208 = vmatmul.mubr.f32.gmra.mrb[0].mxu0 %v141
  %v209 = vpop.f32.mrb[0].mxu0
  %v210 = vadd.f32 %v138, %v209
  %v211 = vpop.f32.mrb[0].mxu0
  %212 = vdwg.mxu0
  %v213 = vmul.f32 %v16, %v16
  %v214 = vrot.slane %v213, 4
  %v215 = vadd.f32 %v213, %v214
  %v216 = vrot.slane %v215, 2
  %v217 = vadd.f32 %v215, %v216
  %v218 = vrot.slane %v217, 1
  %v219 = vadd.f32 %v217, %v218
  %v220 = vmul.f32 %v219, %v210
  %221 = vmatprep.subr.mxu0 0.0
  %222 = vmatpush1.xpose.msra.mxu0 %v210
  %223 = vmatprep.subr.mxu0 0.0
  %224 = vmatpush1.xpose.msra.mxu0 0.0
  %225 = vmatprep.subr.mxu0 0.0
  %226 = vmatpush1.xpose.msra.mxu0 0.0
  %227 = vmatprep.subr.mxu0 0.0
  %228 = vmatpush1.xpose.msra.mxu0 0.0
  %229 = vmatprep.subr.mxu0 0.0
  %230 = vmatpush1.xpose.msra.mxu0 0.0
  %231 = vmatprep.subr.mxu0 0.0
  %232 = vmatpush1.xpose.msra.mxu0 0.0
  %233 = vmatprep.subr.mxu0 0.0
  %234 = vmatpush1.xpose.msra.mxu0 0.0
  %235 = vmatprep.subr.mxu0 0.0
  %236 = vmatpush1.xpose.msra.mxu0 0.0
  %237 = vmatprep.subr.mxu0 0.0
  %238 = vmatpush1.xpose.msra.mxu0 0.0
  %239 = vmatprep.subr.mxu0 0.0
  %240 = vmatpush1.xpose.msra.mxu0 0.0
  %241 = vmatprep.subr.mxu0 0.0
  %242 = vmatpush1.xpose.msra.mxu0 0.0
  %243 = vmatprep.subr.mxu0 0.0
  %244 = vmatpush1.xpose.msra.mxu0 0.0
  %245 = vmatprep.subr.mxu0 0.0
  %246 = vmatpush1.xpose.msra.mxu0 0.0
  %247 = vmatprep.subr.mxu0 0.0
  %248 = vmatpush1.xpose.msra.mxu0 0.0
  %249 = vmatprep.subr.mxu0 0.0
  %250 = vmatpush1.xpose.msra.mxu0 0.0
  %251 = vmatprep.subr.mxu0 0.0
  %252 = vmatpush1.xpose.msra.mxu0 0.0
  %253 = vmatprep.subr.mxu0 0.0
  %254 = vmatpush1.xpose.msra.mxu0 0.0
  %255 = vmatprep.subr.mxu0 0.0
  %256 = vmatpush1.xpose.msra.mxu0 0.0
  %257 = vmatprep.subr.mxu0 0.0
  %258 = vmatpush1.xpose.msra.mxu0 0.0
  %259 = vmatprep.subr.mxu0 0.0
  %260 = vmatpush1.xpose.msra.mxu0 0.0
  %261 = vmatprep.subr.mxu0 0.0
  %262 = vmatpush1.xpose.msra.mxu0 0.0
  %263 = vmatprep.subr.mxu0 0.0
  %264 = vmatpush1.xpose.msra.mxu0 0.0
  %265 = vmatprep.subr.mxu0 0.0
  %266 = vmatpush1.xpose.msra.mxu0 0.0
  %267 = vmatprep.subr.mxu0 0.0
  %268 = vmatpush1.xpose.msra.mxu0 0.0
  %269 = vmatprep.subr.mxu0 0.0
  %270 = vmatpush1.xpose.msra.mxu0 0.0
  %271 = vmatprep.subr.mxu0 0.0
  %272 = vmatpush1.xpose.msra.mxu0 0.0
  %273 = vmatprep.subr.mxu0 0.0
  %274 = vmatpush1.xpose.msra.mxu0 0.0
  %275 = vmatprep.subr.mxu0 0.0
  %276 = vmatpush1.xpose.msra.mxu0 0.0
  %277 = vmatprep.subr.mxu0 0.0
  %278 = vmatpush1.xpose.msra.mxu0 0.0
  %279 = vmatprep.subr.mxu0 0.0
  %280 = vmatpush1.xpose.msra.mxu0 0.0
  %281 = vmatprep.subr.mxu0 0.0
  %282 = vmatpush1.xpose.msra.mxu0 0.0
  %283 = vmatprep.subr.mxu0 0.0
  %284 = vmatpush1.xpose.msra.mxu0 0.0
  %285 = vmatprep.mubr.f32.mxu0 0.0
  %286 = vmatmul.mubr.f32.gmra.mrb[0].mxu0 %v210
  %v287 = vpop.f32.mrb[0].mxu0
  %v288 = vadd.f32 0.0, %v287
  %v289 = vpop.f32.mrb[0].mxu0
  %290 = vdwg.mxu0
  %v291 = vmul.f32 %v288, 0.0078125
  %v292 = vlaneseq
  %v293 = vshrl.u32 %v292, 7
  %v294 = vlaneseq
  %v295 = vand.u32 %v294, 127
  %vm296 = vcmp.eq.s32.totalorder %v293, %v295
  %v297 = vsel %vm296, 1, 0
  %v298 = vcvt.s32.f32 %v297
  %vm299 = vcmp.eq.s32.totalorder %v295, 0
  %vm300 = vcmp.ge.s32.totalorder %v293, 0
  %vm301 = vmand %vm299, %vm300
  %v302 = vsel %vm301, %v291, 0.0
  %vm303 = vcmask 27648
  %v304 = vsel %vm303, %v302, 0.0
  %305 = vadd.xlane.f32.xlu0 %v304
  %v306 = vpop.xlane.xlu0 %305
  %vm307 = vcmp.eq.s32.totalorder %v293, 0
  %vm308 = vcmp.ge.s32.totalorder %v295, 0
  %vm309 = vmand %vm307, %vm308
  %v310 = vsel %vm309, %v291, 0.0
  %v311 = vsel %vm303, %v310, 0.0
  %v312 = vrot.slane %v311, 4
  %v313 = vadd.f32 %v311, %v312
  %v314 = vrot.slane %v313, 2
  %v315 = vadd.f32 %v313, %v314
  %v316 = vrot.slane %v315, 1
  %v317 = vadd.f32 %v315, %v316
  %v318 = vsel %vm307, %v306, 0.0
  %vm319 = vcmask 1043456
  %v320 = vsel %vm319, %v318, 0.0
  %v321 = vrot.slane %v320, 4
  %v322 = vadd.f32 %v320, %v321
  %v323 = vrot.slane %v322, 2
  %v324 = vadd.f32 %v322, %v323
  %v325 = vrot.slane %v324, 1
  %v326 = vadd.f32 %v324, %v325
  %v327 = vrsqrt.pop %v326
  %v328 = vmul.f32 %v306, %v327
  %v329 = vmul.f32 %v317, %v327
  %v330 = vmul.f32 %v328, %v329
  %v331 = vsub.f32 %v291, %v330
  %v332 = vsel %vm307, 1, 0
  %v333 = vcvt.s32.f32 %v332
  %v334 = vsub.f32 %v328, %v333
  %v335 = vmul.f32 %v334, %v327
  %v336 = vsel %vm307, %v298, 0.0
  %v337 = vsel %vm303, %v336, 0.0
  %v338 = vrot.slane %v337, 4
  %v339 = vadd.f32 %v337, %v338
  %v340 = vrot.slane %v339, 2
  %v341 = vadd.f32 %v339, %v340
  %v342 = vrot.slane %v341, 1
  %v343 = vadd.f32 %v341, %v342
  %v344 = vmul.f32 %v335, %v343
  %v345 = vsub.f32 %v298, %v344
  %vm346 = vcmp.eq.s32.totalorder %v295, 1
  %vm347 = vcmp.ge.s32.totalorder %v293, 1
  %vm348 = vmand %vm346, %vm347
  %v349 = vsel %vm348, %v331, 0.0
  %v350 = vsel %vm303, %v349, 0.0
  %351 = vadd.xlane.f32.xlu0 %v350
  %v352 = vpop.xlane.xlu0 %351
  %vm353 = vcmp.eq.s32.totalorder %v293, 1
  %vm354 = vcmp.ge.s32.totalorder %v295, 1
  %vm355 = vmand %vm353, %vm354
  %v356 = vsel %vm355, %v331, 0.0
  %v357 = vsel %vm303, %v356, 0.0
  %v358 = vrot.slane %v357, 4
  %v359 = vadd.f32 %v357, %v358
  %v360 = vrot.slane %v359, 2
  %v361 = vadd.f32 %v359, %v360
  %v362 = vrot.slane %v361, 1
  %v363 = vadd.f32 %v361, %v362
  %v364 = vsel %vm353, %v352, 0.0
  %v365 = vsel %vm319, %v364, 0.0
  %v366 = vrot.slane %v365, 4
  %v367 = vadd.f32 %v365, %v366
  %v368 = vrot.slane %v367, 2
  %v369 = vadd.f32 %v367, %v368
  %v370 = vrot.slane %v369, 1
  %v371 = vadd.f32 %v369, %v370
  %v372 = vrsqrt.pop %v371
  %v373 = vmul.f32 %v352, %v372
  %v374 = vmul.f32 %v363, %v372
  %v375 = vmul.f32 %v373, %v374
  %v376 = vsub.f32 %v331, %v375
  %v377 = vsel %vm353, 1, 0
  %v378 = vcvt.s32.f32 %v377
  %v379 = vsub.f32 %v373, %v378
  %v380 = vmul.f32 %v379, %v372
  %v381 = vsel %vm353, %v345, 0.0
  %v382 = vsel %vm303, %v381, 0.0
  %v383 = vrot.slane %v382, 4
  %v384 = vadd.f32 %v382, %v383
  %v385 = vrot.slane %v384, 2
  %v386 = vadd.f32 %v384, %v385
  %v387 = vrot.slane %v386, 1
  %v388 = vadd.f32 %v386, %v387
  %v389 = vmul.f32 %v380, %v388
  %v390 = vsub.f32 %v345, %v389
  %vm391 = vcmp.eq.s32.totalorder %v295, 2
  %vm392 = vcmp.ge.s32.totalorder %v293, 2
  %vm393 = vmand %vm391, %vm392
  %v394 = vsel %vm393, %v376, 0.0
  %v395 = vsel %vm303, %v394, 0.0
  %396 = vadd.xlane.f32.xlu0 %v395
  %v397 = vpop.xlane.xlu0 %396
  %vm398 = vcmp.eq.s32.totalorder %v293, 2
  %vm399 = vcmp.ge.s32.totalorder %v295, 2
  %vm400 = vmand %vm398, %vm399
  %v401 = vsel %vm400, %v376, 0.0
  %v402 = vsel %vm303, %v401, 0.0
  %v403 = vrot.slane %v402, 4
  %v404 = vadd.f32 %v402, %v403
  %v405 = vrot.slane %v404, 2
  %v406 = vadd.f32 %v404, %v405
  %v407 = vrot.slane %v406, 1
  %v408 = vadd.f32 %v406, %v407
  %v409 = vsel %vm398, %v397, 0.0
  %v410 = vsel %vm319, %v409, 0.0
  %v411 = vrot.slane %v410, 4
  %v412 = vadd.f32 %v410, %v411
  %v413 = vrot.slane %v412, 2
  %v414 = vadd.f32 %v412, %v413
  %v415 = vrot.slane %v414, 1
  %v416 = vadd.f32 %v414, %v415
  %v417 = vrsqrt.pop %v416
  %v418 = vmul.f32 %v397, %v417
  %v419 = vmul.f32 %v408, %v417
  %v420 = vmul.f32 %v418, %v419
  %v421 = vsub.f32 %v376, %v420
  %v422 = vsel %vm398, 1, 0
  %v423 = vcvt.s32.f32 %v422
  %v424 = vsub.f32 %v418, %v423
  %v425 = vmul.f32 %v424, %v417
  %v426 = vsel %vm398, %v390, 0.0
  %v427 = vsel %vm303, %v426, 0.0
  %v428 = vrot.slane %v427, 4
  %v429 = vadd.f32 %v427, %v428
  %v430 = vrot.slane %v429, 2
  %v431 = vadd.f32 %v429, %v430
  %v432 = vrot.slane %v431, 1
  %v433 = vadd.f32 %v431, %v432
  %v434 = vmul.f32 %v425, %v433
  %v435 = vsub.f32 %v390, %v434
  %vm436 = vcmp.eq.s32.totalorder %v295, 3
  %vm437 = vcmp.ge.s32.totalorder %v293, 3
  %vm438 = vmand %vm436, %vm437
  %v439 = vsel %vm438, %v421, 0.0
  %v440 = vsel %vm303, %v439, 0.0
  %441 = vadd.xlane.f32.xlu0 %v440
  %v442 = vpop.xlane.xlu0 %441
  %vm443 = vcmp.eq.s32.totalorder %v293, 3
  %v444 = vsel %vm443, %v442, 0.0
  %v445 = vsel %vm319, %v444, 0.0
  %v446 = vrot.slane %v445, 4
  %v447 = vadd.f32 %v445, %v446
  %v448 = vrot.slane %v447, 2
  %v449 = vadd.f32 %v447, %v448
  %v450 = vrot.slane %v449, 1
  %v451 = vadd.f32 %v449, %v450
  %v452 = vrsqrt.pop %v451
  %v453 = vmul.f32 %v442, %v452
  %v454 = vsel %vm443, 1, 0
  %v455 = vcvt.s32.f32 %v454
  %v456 = vsub.f32 %v453, %v455
  %v457 = vmul.f32 %v456, %v452
  %v458 = vsel %vm443, %v435, 0.0
  %v459 = vsel %vm303, %v458, 0.0
  %v460 = vrot.slane %v459, 4
  %v461 = vadd.f32 %v459, %v460
  %v462 = vrot.slane %v461, 2
  %v463 = vadd.f32 %v461, %v462
  %v464 = vrot.slane %v463, 1
  %v465 = vadd.f32 %v463, %v464
  %v466 = vmul.f32 %v457, %v465
  %v467 = vsub.f32 %v435, %v466
  %vm468 = vcmask 31744
  %v470 = vsel %vm468, %v467, 0
  %v473 = vsel %vm319, %v210, 0
  %v476 = vsel %vm319, %v220, 0
  %478 = vmatprep.subr.mxu0 %v476
  %479 = vmatpush1.msra.mxu0 %v473
  %480 = vmatprep.subr.mxu0 0.0
  %481 = vmatpush1.msra.mxu0 0.0
  %482 = vmatprep.subr.mxu0 0.0
  %483 = vmatpush1.msra.mxu0 0.0
  %484 = vmatprep.subr.mxu0 0.0
  %485 = vmatpush1.msra.mxu0 0.0
  %486 = vmatprep.subr.mxu0 0.0
  %487 = vmatpush1.msra.mxu0 0.0
  %488 = vmatprep.subr.mxu0 0.0
  %489 = vmatpush1.msra.mxu0 0.0
  %490 = vmatprep.subr.mxu0 0.0
  %491 = vmatpush1.msra.mxu0 0.0
  %492 = vmatprep.subr.mxu0 0.0
  %493 = vmatpush1.msra.mxu0 0.0
  %494 = vmatprep.subr.mxu0 0.0
  %495 = vmatpush1.msra.mxu0 0.0
  %496 = vmatprep.subr.mxu0 0.0
  %497 = vmatpush1.msra.mxu0 0.0
  %498 = vmatprep.subr.mxu0 0.0
  %499 = vmatpush1.msra.mxu0 0.0
  %500 = vmatprep.subr.mxu0 0.0
  %501 = vmatpush1.msra.mxu0 0.0
  %502 = vmatprep.subr.mxu0 0.0
  %503 = vmatpush1.msra.mxu0 0.0
  %504 = vmatprep.subr.mxu0 0.0
  %505 = vmatpush1.msra.mxu0 0.0
  %506 = vmatprep.subr.mxu0 0.0
  %507 = vmatpush1.msra.mxu0 0.0
  %508 = vmatprep.subr.mxu0 0.0
  %509 = vmatpush1.msra.mxu0 0.0
  %510 = vmatprep.subr.mxu0 0.0
  %511 = vmatpush1.msra.mxu0 0.0
  %512 = vmatprep.subr.mxu0 0.0
  %513 = vmatpush1.msra.mxu0 0.0
  %514 = vmatprep.subr.mxu0 0.0
  %515 = vmatpush1.msra.mxu0 0.0
  %516 = vmatprep.subr.mxu0 0.0
  %517 = vmatpush1.msra.mxu0 0.0
  %518 = vmatprep.subr.mxu0 0.0
  %519 = vmatpush1.msra.mxu0 0.0
  %520 = vmatprep.subr.mxu0 0.0
  %521 = vmatpush1.msra.mxu0 0.0
  %522 = vmatprep.subr.mxu0 0.0
  %523 = vmatpush1.msra.mxu0 0.0
  %524 = vmatprep.subr.mxu0 0.0
  %525 = vmatpush1.msra.mxu0 0.0
  %526 = vmatprep.subr.mxu0 0.0
  %527 = vmatpush1.msra.mxu0 0.0
  %528 = vmatprep.subr.mxu0 0.0
  %529 = vmatpush1.msra.mxu0 0.0
  %530 = vmatprep.subr.mxu0 0.0
  %531 = vmatpush1.msra.mxu0 0.0
  %532 = vmatprep.subr.mxu0 0.0
  %533 = vmatpush1.msra.mxu0 0.0
  %534 = vmatprep.subr.mxu0 0.0
  %535 = vmatpush1.msra.mxu0 0.0
  %536 = vmatprep.subr.mxu0 0.0
  %537 = vmatpush1.msra.mxu0 0.0
  %538 = vmatprep.subr.mxu0 0.0
  %539 = vmatpush1.msra.mxu0 0.0
  %540 = vmatprep.subr.mxu0 0.0
  %541 = vmatpush1.msra.mxu0 0.0
  %542 = vmatprep.mubr.f32.mxu0 0.0
  %543 = vmatmul.mubr.f32.gmra.mrb[0].mxu0 %v470
  %v544 = vpop.f32.mrb[0].mxu0
  %v545 = vadd.f32 0.0, %v544
  %v546 = vpop.f32.mrb[0].mxu0
  %v547 = vadd.f32 0.0, %v546
  %548 = vdwg.mxu0
  %v549 = vmul.f32 %v545, %v547
  %v550 = vsel %vm319, %v549, 0.0
  %551 = vadd.xlane.f32.xlu0 %v550
  %v552 = vpop.xlane.xlu0 %551
  %v553 = vmul.f32 %v552, 0.0078125
  %v554 = vmul.f32 %v15, %v553
  %vm555 = vcmask 273672
  %v556 = vsel %vm555, %v554, 0.0
  %v557 = vrot.slane %v556, 4
  %v558 = vadd.f32 %v556, %v557
  %v559 = vrot.slane %v558, 2
  %v560 = vadd.f32 %v558, %v559
  %v561 = vrot.slane %v560, 1
  %v562 = vadd.f32 %v560, %v561
  %v563 = vmul.f32 %v553, %v545
  %v564 = vsub.f32 %v547, %v563
  %v565 = vmul.f32 %v564, %v564
  %v566 = vsel %vm319, %v565, 0.0
  %567 = vadd.xlane.f32.xlu0 %v566
  %v568 = vpop.xlane.xlu0 %567
  %v569 = vmul.f32 %v568, 0.0078125
  %v570 = vadd.s32 %v295, 1
  %vm571 = vcmp.eq.s32.totalorder %v293, %v570
  %v572 = vsel %vm571, 1, 0
  %v573 = vcvt.s32.f32 %v572
  %v574 = vmul.f32 %v333, %v562
  %v576 = vsel %vm468, %v573, 0
  %v579 = vsel %vm319, %v569, 0
  %581 = vmatprep.subr.mxu0 0.0
  %582 = vmatpush1.msra.mxu0 %v579
  %583 = vmatprep.subr.mxu0 0.0
  %584 = vmatpush1.msra.mxu0 0.0
  %585 = vmatprep.subr.mxu0 0.0
  %586 = vmatpush1.msra.mxu0 0.0
  %587 = vmatprep.subr.mxu0 0.0
  %588 = vmatpush1.msra.mxu0 0.0
  %589 = vmatprep.subr.mxu0 0.0
  %590 = vmatpush1.msra.mxu0 0.0
  %591 = vmatprep.subr.mxu0 0.0
  %592 = vmatpush1.msra.mxu0 0.0
  %593 = vmatprep.subr.mxu0 0.0
  %594 = vmatpush1.msra.mxu0 0.0
  %595 = vmatprep.subr.mxu0 0.0
  %596 = vmatpush1.msra.mxu0 0.0
  %597 = vmatprep.subr.mxu0 0.0
  %598 = vmatpush1.msra.mxu0 0.0
  %599 = vmatprep.subr.mxu0 0.0
  %600 = vmatpush1.msra.mxu0 0.0
  %601 = vmatprep.subr.mxu0 0.0
  %602 = vmatpush1.msra.mxu0 0.0
  %603 = vmatprep.subr.mxu0 0.0
  %604 = vmatpush1.msra.mxu0 0.0
  %605 = vmatprep.subr.mxu0 0.0
  %606 = vmatpush1.msra.mxu0 0.0
  %607 = vmatprep.subr.mxu0 0.0
  %608 = vmatpush1.msra.mxu0 0.0
  %609 = vmatprep.subr.mxu0 0.0
  %610 = vmatpush1.msra.mxu0 0.0
  %611 = vmatprep.subr.mxu0 0.0
  %612 = vmatpush1.msra.mxu0 0.0
  %613 = vmatprep.subr.mxu0 0.0
  %614 = vmatpush1.msra.mxu0 0.0
  %615 = vmatprep.subr.mxu0 0.0
  %616 = vmatpush1.msra.mxu0 0.0
  %617 = vmatprep.subr.mxu0 0.0
  %618 = vmatpush1.msra.mxu0 0.0
  %619 = vmatprep.subr.mxu0 0.0
  %620 = vmatpush1.msra.mxu0 0.0
  %621 = vmatprep.subr.mxu0 0.0
  %622 = vmatpush1.msra.mxu0 0.0
  %623 = vmatprep.subr.mxu0 0.0
  %624 = vmatpush1.msra.mxu0 0.0
  %625 = vmatprep.subr.mxu0 0.0
  %626 = vmatpush1.msra.mxu0 0.0
  %627 = vmatprep.subr.mxu0 0.0
  %628 = vmatpush1.msra.mxu0 0.0
  %629 = vmatprep.subr.mxu0 0.0
  %630 = vmatpush1.msra.mxu0 0.0
  %631 = vmatprep.subr.mxu0 0.0
  %632 = vmatpush1.msra.mxu0 0.0
  %633 = vmatprep.subr.mxu0 0.0
  %634 = vmatpush1.msra.mxu0 0.0
  %635 = vmatprep.subr.mxu0 0.0
  %636 = vmatpush1.msra.mxu0 0.0
  %637 = vmatprep.subr.mxu0 0.0
  %638 = vmatpush1.msra.mxu0 0.0
  %639 = vmatprep.subr.mxu0 0.0
  %640 = vmatpush1.msra.mxu0 0.0
  %641 = vmatprep.subr.mxu0 0.0
  %642 = vmatpush1.msra.mxu0 0.0
  %643 = vmatprep.subr.mxu0 0.0
  %644 = vmatpush1.msra.mxu0 0.0
  %645 = vmatprep.mubr.f32.mxu0 0.0
  %646 = vmatmul.mubr.f32.gmra.mrb[0].mxu0 %v576
  %v647 = vpop.f32.mrb[0].mxu0
  %v648 = vadd.f32 0.0, %v647
  %v649 = vpop.f32.mrb[0].mxu0
  %650 = vdwg.mxu0
  %652 = vrot.lane.b32.xlu0 %v648, 33
  %v653 = vpop.permute.xlu0 %652
  %v655 = vadd.f32 %v574, %v653
  %657 = vrot.lane.b32.xlu0 %v655, 95
  %v658 = vpop.permute.xlu0 %657
  %vm660 = vcmask 4096
  %661 = vst.msk [vmem:[%s2] sm:$0x1f] %vm660, %v658
  // Predicated region
  $region10: #{spinx_operator_forward.1} parent=0 // pred_check
    _
  $region11: #{spinx_operator_forward.1} parent=0 // pred_check_branch
    %663 = sbr.rel (0) target = $region13
  $region12: #{spinx_operator_forward.1} parent=0 // pred_region
    _
  $region13: #{spinx_operator_forward.1} parent=0 // pred_fallthru
    _
  // Predicated region
  $region14: #{spinx_operator_forward.1} parent=0 // pred_check
    _
  $region15: #{spinx_operator_forward.1} parent=0 // pred_check_branch
    %665 = sbr.rel (0) target = $region17
  $region16: #{spinx_operator_forward.1} parent=0 // pred_region
    _
  $region17: #{spinx_operator_forward.1} parent=0 // pred_fallthru
    _

</llo_original>
